<compile_context>
chip_gen: v7x
topology: tpu7x:2x2x1
jax: 0.10.0
libtpu: 0.0.40
codegen_flags: <defaults>
</compile_context>

<pallas_src>
import math

import jax
import jax.numpy as jnp
from jax.experimental import pallas as pl
from jax.experimental.pallas import tpu as pltpu


# ---------------------------------------------------------------------------
# Kernel: one fused LSTM cell step.
#   xh_ref : [B, I+H]   concatenated (x | h) rows
#   c_ref  : [B, H]     previous cell state
#   w_ref  : [I+H, 4H]  packed weights, gate order (i, f, o, g)
#   b_ref  : [1, 4H]    combined bias (b_i* + b_h*), f32
#   hc_out : [2B, H]    rows [0:B] = h_new, rows [B:2B] = c_new
# ---------------------------------------------------------------------------
def lstm_cell_kernel(xh_ref, c_ref, w_ref, b_ref, hc_out_ref):
    H = c_ref.shape[-1]
    # Single MXU matmul producing all 4 gates; f32 accumulation regardless of
    # weight dtype (weights may be bf16).
    lhs = xh_ref[...].astype(w_ref.dtype)
    gates = jnp.dot(lhs, w_ref[...], preferred_element_type=jnp.float32)
    gates = gates + b_ref[...]

    # (i, f, o) are contiguous -> one sigmoid over a [B, 3H] slab; g is tanh.
    sig = jax.nn.sigmoid(gates[:, : 3 * H])
    i = sig[:, 0:H]
    f = sig[:, H:2 * H]
    o = sig[:, 2 * H:3 * H]
    g = jnp.tanh(gates[:, 3 * H:])

    c_new = f * c_ref[...] + i * g
    h_new = o * jnp.tanh(c_new)

    # Single packed store.
    hc_out_ref[...] = jnp.concatenate([h_new, c_new], axis=0)


def lstm_cell(xh, c, w, b):
    """xh [B, I+H], c [B, H], w [I+H, 4H], b [1, 4H] -> (h_new [B,H], c_new [B,H])."""
    B, H = c.shape
    vmem = pl.BlockSpec(memory_space=pltpu.MemorySpace.VMEM)
    hc = pl.pallas_call(
        lstm_cell_kernel,
        out_shape=jax.ShapeDtypeStruct((2 * B, H), jnp.float32),
        in_specs=[vmem, vmem, vmem, vmem],
        out_specs=vmem,
    )(xh, c, w, b)
    return hc[:B], hc[B:]


# ---------------------------------------------------------------------------
# Parameter init (mirrors NaiveLSTM.reset_weigths: U(-stdv, stdv)).
# ---------------------------------------------------------------------------
def init_naive_lstm_params(key, input_size, hidden_size):
    stdv = 1.0 / math.sqrt(hidden_size)
    names_shapes = [
        ("w_ii", (hidden_size, input_size)), ("w_hi", (hidden_size, hidden_size)),
        ("b_ii", (hidden_size, 1)), ("b_hi", (hidden_size, 1)),
        ("w_if", (hidden_size, input_size)), ("w_hf", (hidden_size, hidden_size)),
        ("b_if", (hidden_size, 1)), ("b_hf", (hidden_size, 1)),
        ("w_io", (hidden_size, input_size)), ("w_ho", (hidden_size, hidden_size)),
        ("b_io", (hidden_size, 1)), ("b_ho", (hidden_size, 1)),
        ("w_ig", (hidden_size, input_size)), ("w_hg", (hidden_size, hidden_size)),
        ("b_ig", (hidden_size, 1)), ("b_hg", (hidden_size, 1)),
    ]
    keys = jax.random.split(key, len(names_shapes))
    params = {}
    for k, (name, shape) in zip(keys, names_shapes):
        params[name] = jax.random.uniform(
            k, shape, dtype=jnp.float32, minval=-stdv, maxval=stdv)
    return params


def prepare_lstm_weights(params, weights_dtype=jnp.float32):
    """One-time weight packing (hoisted out of the per-call path).

    Gate order is (i, f, o, g) so the sigmoid gates are contiguous.
    Returns {"w": [I+H, 4H] (weights_dtype), "b": [1, 4H] (f32)}.
    """
    wx = jnp.concatenate(
        [params["w_ii"], params["w_if"], params["w_io"], params["w_ig"]], axis=0)  # [4H, I]
    wh = jnp.concatenate(
        [params["w_hi"], params["w_hf"], params["w_ho"], params["w_hg"]], axis=0)  # [4H, H]
    bias = jnp.concatenate(
        [params["b_ii"] + params["b_hi"],
         params["b_if"] + params["b_hf"],
         params["b_io"] + params["b_ho"],
         params["b_ig"] + params["b_hg"]], axis=0)                                 # [4H, 1]
    w_packed = jnp.concatenate([wx, wh], axis=1).T                                 # [I+H, 4H]
    b_row = bias.reshape(1, -1).astype(jnp.float32)                                # [1, 4H]
    return {"w": w_packed.astype(weights_dtype), "b": b_row}


# ---------------------------------------------------------------------------
# Forward (jit'ed): mirrors NaiveLSTM.forward with seq_size = 1.
#   inputs: [B, 1, I]; state: (h [1, B, H], c [1, B, H]) or None.
# ---------------------------------------------------------------------------
@jax.jit
def naive_lstm_forward(packed, inputs, state):
    w, b = packed["w"], packed["b"]
    H = b.shape[-1] // 4
    B = inputs.shape[0]
    if state is None:
        h_row = jnp.zeros((B, H), jnp.float32)
        c_row = jnp.zeros((B, H), jnp.float32)
    else:
        h, c = state
        h_row = h[0]          # [B, H] (row layout; no transpose needed)
        c_row = c[0]

    seq_size = 1  # hardcoded, as in the PyTorch module
    hidden_seq = []
    for t in range(seq_size):
        x_row = inputs[:, t, :]                               # [B, I]
        xh = jnp.concatenate([x_row, h_row], axis=-1)         # [B, I+H]
        h_row, c_row = lstm_cell(xh, c_row, w, b)
        hidden_seq.append(h_row[None])                        # [1, B, H]

    hidden_seq = jnp.concatenate(hidden_seq, axis=0)
    return hidden_seq, (h_row[None], c_row[None])


# ---------------------------------------------------------------------------
# Pure-JAX reference replicating the PyTorch column-vector math.
# ---------------------------------------------------------------------------
def _reference_forward(params, inputs, state):
    h, c = state
    h_t = h[0].T
    c_t = c[0].T
    x = inputs[:, 0, :].T
    p = params
    i = jax.nn.sigmoid(p["w_ii"] @ x + p["b_ii"] + p["w_hi"] @ h_t + p["b_hi"])
    f = jax.nn.sigmoid(p["w_if"] @ x + p["b_if"] + p["w_hf"] @ h_t + p["b_hf"])
    g = jnp.tanh(p["w_ig"] @ x + p["b_ig"] + p["w_hg"] @ h_t + p["b_hg"])
    o = jax.nn.sigmoid(p["w_io"] @ x + p["b_io"] + p["w_ho"] @ h_t + p["b_ho"])
    c_next = f * c_t + i * g
    h_next = o * jnp.tanh(c_next)
    return h_next.T[None], c_next.T[None]


if __name__ == "__main__":
    input_size = 10      # matches the PyTorch example `torch.ones(1, 1, 10)`
    hidden_size = 32

    key = jax.random.PRNGKey(0)
    k_params, k_x, k_h, k_c = jax.random.split(key, 4)

    params = init_naive_lstm_params(k_params, input_size, hidden_size)
    packed = prepare_lstm_weights(params)                     # done once, f32

    inputs = jax.random.normal(k_x, (1, 1, input_size), dtype=jnp.float32)
    h0 = jax.random.normal(k_h, (1, 1, hidden_size), dtype=jnp.float32)
    c0 = jax.random.normal(k_c, (1, 1, hidden_size), dtype=jnp.float32)

    hidden_seq, (h_next, c_next) = naive_lstm_forward(packed, inputs, (h0, c0))
    jax.block_until_ready((hidden_seq, h_next, c_next))

    # Check against the pure-JAX reference of the PyTorch math.
    h_ref, c_ref = _reference_forward(params, inputs, (h0, c0))
    assert hidden_seq.shape == (1, 1, hidden_size)
    assert h_next.shape == (1, 1, hidden_size)
    assert c_next.shape == (1, 1, hidden_size)
    assert jnp.allclose(h_next, h_ref, atol=1e-5, rtol=1e-5)
    assert jnp.allclose(c_next, c_ref, atol=1e-5, rtol=1e-5)
    assert jnp.allclose(hidden_seq, h_ref, atol=1e-5, rtol=1e-5)

    # bf16-weight variant: MXU operands bf16, accumulation / state math f32.
    packed_bf16 = prepare_lstm_weights(params, weights_dtype=jnp.bfloat16)
    _, (h_bf16, c_bf16) = naive_lstm_forward(packed_bf16, inputs, (h0, c0))
    jax.block_until_ready((h_bf16, c_bf16))
    assert jnp.allclose(h_bf16, h_ref, atol=3e-2, rtol=3e-2)
    assert jnp.allclose(c_bf16, c_ref, atol=3e-2, rtol=3e-2)

    # Batched sanity check (B = 8 rows -> sublanes / MXU rows actually filled).
    B = 8
    kb1, kb2, kb3 = jax.random.split(jax.random.PRNGKey(1), 3)
    xb = jax.random.normal(kb1, (B, 1, input_size), dtype=jnp.float32)
    hb = jax.random.normal(kb2, (1, B, hidden_size), dtype=jnp.float32)
    cb = jax.random.normal(kb3, (1, B, hidden_size), dtype=jnp.float32)
    _, (hb_next, cb_next) = naive_lstm_forward(packed, xb, (hb, cb))
    jax.block_until_ready((hb_next, cb_next))
    hb_ref, cb_ref = _reference_forward(params, xb, (hb, cb))
    assert jnp.allclose(hb_next, hb_ref, atol=1e-5, rtol=1e-5)
    assert jnp.allclose(cb_next, cb_ref, atol=1e-5, rtol=1e-5)

    print("KERNEL_OK")
</pallas_src>

<mosaic_0001>
module attributes {stable_mosaic.version = 11 : i64} {
  func.func @lstm_cell_kernel(%arg0: memref<1x42xf32, #tpu.memory_space<vmem>>, %arg1: memref<1x32xf32, #tpu.memory_space<vmem>>, %arg2: memref<42x128xf32, #tpu.memory_space<vmem>>, %arg3: memref<1x128xf32, #tpu.memory_space<vmem>>, %arg4: memref<2x32xf32, #tpu.memory_space<vmem>>) attributes {dimension_semantics = [], scalar_prefetch = 0 : i64, scratch_operands = 0 : i64, tpu.core_type = #tpu.core_type<tc>} {
    %c0 = arith.constant 0 : index
    %c0_0 = arith.constant 0 : index
    %0 = vector.load %arg0[%c0, %c0_0] : memref<1x42xf32, #tpu.memory_space<vmem>>, vector<1x42xf32>
    %c0_1 = arith.constant 0 : index
    %c0_2 = arith.constant 0 : index
    %1 = vector.load %arg2[%c0_1, %c0_2] : memref<42x128xf32, #tpu.memory_space<vmem>>, vector<42x128xf32>
    %cst = arith.constant dense<0.000000e+00> : vector<1x128xf32>
    %2 = tpu.matmul %0, %1, %cst {dimension_numbers = #tpu.dot_dimension_numbers<[1], [0], [0], [1], [0, 0, 1, 1], [], []>} : vector<1x42xf32>, vector<42x128xf32>, vector<1x128xf32> -> vector<1x128xf32>
    %c0_3 = arith.constant 0 : index
    %c0_4 = arith.constant 0 : index
    %3 = vector.load %arg3[%c0_3, %c0_4] : memref<1x128xf32, #tpu.memory_space<vmem>>, vector<1x128xf32>
    %4 = arith.addf %2, %3 : vector<1x128xf32>
    %5 = vector.extract_strided_slice %4 {offsets = [0, 0], sizes = [1, 96], strides = [1, 1]} : vector<1x128xf32> to vector<1x96xf32>
    %6 = arith.negf %5 : vector<1x96xf32>
    %7 = math.exp %6 : vector<1x96xf32>
    %cst_5 = arith.constant 1.000000e+00 : f32
    %8 = vector.broadcast %cst_5 : f32 to vector<1x96xf32>
    %9 = arith.addf %8, %7 : vector<1x96xf32>
    %10 = arith.divf %8, %9 : vector<1x96xf32>
    %11 = vector.extract_strided_slice %10 {offsets = [0, 0], sizes = [1, 32], strides = [1, 1]} : vector<1x96xf32> to vector<1x32xf32>
    %12 = vector.extract_strided_slice %10 {offsets = [0, 32], sizes = [1, 32], strides = [1, 1]} : vector<1x96xf32> to vector<1x32xf32>
    %13 = vector.extract_strided_slice %10 {offsets = [0, 64], sizes = [1, 32], strides = [1, 1]} : vector<1x96xf32> to vector<1x32xf32>
    %14 = vector.extract_strided_slice %4 {offsets = [0, 96], sizes = [1, 32], strides = [1, 1]} : vector<1x128xf32> to vector<1x32xf32>
    %15 = math.tanh %14 : vector<1x32xf32>
    %c0_6 = arith.constant 0 : index
    %c0_7 = arith.constant 0 : index
    %16 = vector.load %arg1[%c0_6, %c0_7] : memref<1x32xf32, #tpu.memory_space<vmem>>, vector<1x32xf32>
    %17 = arith.mulf %12, %16 : vector<1x32xf32>
    %18 = arith.mulf %11, %15 : vector<1x32xf32>
    %19 = arith.addf %17, %18 : vector<1x32xf32>
    %20 = math.tanh %19 : vector<1x32xf32>
    %21 = arith.mulf %13, %20 : vector<1x32xf32>
    %22 = tpu.concatenate %21, %19 in 0 : vector<1x32xf32>, vector<1x32xf32> -> vector<2x32xf32>
    %c0_8 = arith.constant 0 : index
    %c0_9 = arith.constant 0 : index
    %23 = vector.load %arg4[%c0_8, %c0_9] : memref<2x32xf32, #tpu.memory_space<vmem>>, vector<2x32xf32>
    tpu.vector_store %arg4[%c0_8, %c0_9], %22 {strides = array<i32>} : memref<2x32xf32, #tpu.memory_space<vmem>>, vector<2x32xf32>,
    return
  }
}

</mosaic_0001>

<llo_original>
// kernel: naive_lstm_forward.1
$region0: #{naive_lstm_forward.1}
  #allocation0 [shape = 'u32[]', space=smem, size = 0x4, offset = 0x4, fixed_abs, tag = 'smem constant byte address 0x4 - core index']
  #allocation1 [shape = 'u32[144,128]{1,0:T(1,128)}', space=vmem, size = 0x12000, scoped, tag = 'internal scratch']
  %s0 = inlined_call_operand.vmem [shape: f32[1,42], index: 0, kind: input, shape index: {}]
  %s1 = inlined_call_operand.vmem [shape: f32[1,32], index: 1, kind: input, shape index: {}]
  %s2 = inlined_call_operand.hbm [shape: f32[42,128], index: 2, kind: input, shape index: {}]
  %s3 = inlined_call_operand.vmem [shape: f32[1,128], index: 3, kind: input, shape index: {}]
  %s4 = inlined_call_operand.vmem [shape: f32[2,32], index: 4, kind: output, shape index: {}]
  %s5 = sld [smem:[#allocation0]]
  $region30: #{naive_lstm_forward.1} parent=0
    _
  %s7 = ssub.s32 1, %s5
  %s8 = scalar_select 0, %s7, %s5
  $region1: #{naive_lstm_forward.1} parent=0
    #allocation2 [shape = 'u8[24576]{0}', space=vmem, size = 0x6000, scoped, tag = 'input window, operand 2, single buffered']
    #allocation3 [shape = 's32[1]{0}', space=sflag, size = 0x4, scoped, tag = 'scoped memory for naive_lstm_forward.1']
    %9 = vsyncpa [#allocation3], 0
    // Predicated region
    $region2: #{naive_lstm_forward.1} parent=1 // pred_check
      _
    $region3: #{naive_lstm_forward.1} parent=1 // pred_check_branch
      %11 = sbr.rel (0) target = $region5
    $region4: #{naive_lstm_forward.1} parent=1 // pred_region
      _
    $region5: #{naive_lstm_forward.1} parent=1 // pred_fallthru
      _
    // Predicated region
    $region6: #{naive_lstm_forward.1} parent=1 // pred_check
      _
    $region7: #{naive_lstm_forward.1} parent=1 // pred_check_branch
      %13 = sbr.rel (0) target = $region9
    $region8: #{naive_lstm_forward.1} parent=1 // pred_region
      _
    $region9: #{naive_lstm_forward.1} parent=1 // pred_fallthru
      _
    // Predicated region
    $region10: #{naive_lstm_forward.1} parent=1 // pred_check
      _
    $region11: #{naive_lstm_forward.1} parent=1 // pred_check_branch
      %15 = sbr.rel (0) target = $region13
    $region12: #{naive_lstm_forward.1} parent=1 // pred_region
      %s17 = ssub.s32 768, 768
      %18 = vsyncadd [#allocation3], %s17
      %s19 = sshll.u32 [#allocation2], 4
      %s20 = int_to_ptr.vmem [resolvable:$true] %s19
      %25 = dma.hbm_to_vmem [thread:$0]  %s2, 768, %s20, [#allocation3], 128, 128, 8
    $region13: #{naive_lstm_forward.1} parent=1 // pred_fallthru
      _
    // Predicated region
    $region14: #{naive_lstm_forward.1} parent=1 // pred_check
      _
    $region15: #{naive_lstm_forward.1} parent=1 // pred_check_branch
      %27 = sbr.rel (0) target = $region17
    $region16: #{naive_lstm_forward.1} parent=1 // pred_region
      _
    $region17: #{naive_lstm_forward.1} parent=1 // pred_fallthru
      _
    // Predicated region
    $region18: #{naive_lstm_forward.1} parent=1 // pred_check
      _
    $region19: #{naive_lstm_forward.1} parent=1 // pred_check_branch
      %29 = sbr.rel (0) target = $region21
    $region20: #{naive_lstm_forward.1} parent=1 // pred_region
      %30 = dma.done [#allocation3], 768
    $region21: #{naive_lstm_forward.1} parent=1 // pred_fallthru
      _
    %v31 = vld [vmem:[%s0] sm:$0x1]
    %v32 = vld [vmem:[#allocation2] sm:$0xff]
    %v33 = vld [vmem:[#allocation2 + $0x8] sm:$0xff]
    %v34 = vld [vmem:[#allocation2 + $0x10] sm:$0xff]
    %v35 = vld [vmem:[#allocation2 + $0x18] sm:$0xff]
    %v36 = vld [vmem:[#allocation2 + $0x20] sm:$0xff]
    %v37 = vld [vmem:[#allocation2 + $0x28] sm:$0x3]
    %v38 = vld [vmem:[%s3] sm:$0x1]
    %vm39 = vcmask 343040
    %v41 = vsel %vm39, %v31, 0
    %vm43 = vcmask 1041408
    %v45 = vsel %vm43, %v37, 0
    %47 = vmatprep.subr.mxu0 0.0
    %48 = vmatpush1.msra.mxu0 %v32
    %49 = vmatprep.subr.mxu0 0.0
    %50 = vmatpush1.msra.mxu0 %v33
    %51 = vmatprep.subr.mxu0 0.0
    %52 = vmatpush1.msra.mxu0 %v34
    %53 = vmatprep.subr.mxu0 0.0
    %54 = vmatpush1.msra.mxu0 %v35
    %55 = vmatprep.subr.mxu0 0.0
    %56 = vmatpush1.msra.mxu0 %v36
    %57 = vmatprep.subr.mxu0 0.0
    %58 = vmatpush1.msra.mxu0 %v45
    %59 = vmatprep.subr.mxu0 0.0
    %60 = vmatpush1.msra.mxu0 0.0
    %61 = vmatprep.subr.mxu0 0.0
    %62 = vmatpush1.msra.mxu0 0.0
    %63 = vmatprep.subr.mxu0 0.0
    %64 = vmatpush1.msra.mxu0 0.0
    %65 = vmatprep.subr.mxu0 0.0
    %66 = vmatpush1.msra.mxu0 0.0
    %67 = vmatprep.subr.mxu0 0.0
    %68 = vmatpush1.msra.mxu0 0.0
    %69 = vmatprep.subr.mxu0 0.0
    %70 = vmatpush1.msra.mxu0 0.0
    %71 = vmatprep.subr.mxu0 0.0
    %72 = vmatpush1.msra.mxu0 0.0
    %73 = vmatprep.subr.mxu0 0.0
    %74 = vmatpush1.msra.mxu0 0.0
    %75 = vmatprep.subr.mxu0 0.0
    %76 = vmatpush1.msra.mxu0 0.0
    %77 = vmatprep.subr.mxu0 0.0
    %78 = vmatpush1.msra.mxu0 0.0
    %79 = vmatprep.subr.mxu0 0.0
    %80 = vmatpush1.msra.mxu0 0.0
    %81 = vmatprep.subr.mxu0 0.0
    %82 = vmatpush1.msra.mxu0 0.0
    %83 = vmatprep.subr.mxu0 0.0
    %84 = vmatpush1.msra.mxu0 0.0
    %85 = vmatprep.subr.mxu0 0.0
    %86 = vmatpush1.msra.mxu0 0.0
    %87 = vmatprep.subr.mxu0 0.0
    %88 = vmatpush1.msra.mxu0 0.0
    %89 = vmatprep.subr.mxu0 0.0
    %90 = vmatpush1.msra.mxu0 0.0
    %91 = vmatprep.subr.mxu0 0.0
    %92 = vmatpush1.msra.mxu0 0.0
    %93 = vmatprep.subr.mxu0 0.0
    %94 = vmatpush1.msra.mxu0 0.0
    %95 = vmatprep.subr.mxu0 0.0
    %96 = vmatpush1.msra.mxu0 0.0
    %97 = vmatprep.subr.mxu0 0.0
    %98 = vmatpush1.msra.mxu0 0.0
    %99 = vmatprep.subr.mxu0 0.0
    %100 = vmatpush1.msra.mxu0 0.0
    %101 = vmatprep.subr.mxu0 0.0
    %102 = vmatpush1.msra.mxu0 0.0
    %103 = vmatprep.subr.mxu0 0.0
    %104 = vmatpush1.msra.mxu0 0.0
    %105 = vmatprep.subr.mxu0 0.0
    %106 = vmatpush1.msra.mxu0 0.0
    %107 = vmatprep.subr.mxu0 0.0
    %108 = vmatpush1.msra.mxu0 0.0
    %109 = vmatprep.subr.mxu0 0.0
    %110 = vmatpush1.msra.mxu0 0.0
    %111 = vmatprep.mubr.f32.mxu0 0.0
    %112 = vmatmul.mubr.f32.gmra.mrb[0].mxu0 %v41
    %v113 = vpop.f32.mrb[0].mxu0
    %v114 = vadd.f32 %v38, %v113
    %v115 = vpop.f32.mrb[0].mxu0
    %116 = vdwg.mxu0
    %v117 = vxor.u32 %v114, 2147483648
    %v118 = vmul.f32 %v117, 1.442695
    %v119 = vpow.pop %v118
    %v120 = vadd.f32 %v119, 1.0
    %v121 = vrcp.pop %v120
    %v122 = vmul.f32 1.0, %v121
    %v123 = vtanh.pop %v114
    %v124 = vld [vmem:[%s1] sm:$0x1]
    %v126 = vlaneseq
    %v127 = vshrl.u32 %v126, 7
    %v128 = vsub.s32 0, %v127
    %v129 = vrot.slane %v124, %v128
    %130 = vrot.lane.b32.xlu0 %v129, 32
    %v131 = vpop.permute.xlu0 %130
    %v133 = vmul.f32 %v122, %v131
    %135 = vrot.lane.b32.xlu0 %v123, 32
    %v136 = vpop.permute.xlu0 %135
    %v138 = vmul.f32 %v122, %v136
    %140 = vrot.lane.b32.xlu0 %v138, 32
    %v141 = vpop.permute.xlu0 %140
    %v143 = vadd.f32 %v133, %v141
    %v144 = vtanh.pop %v143
    %146 = vrot.lane.b32.xlu0 %v144, 32
    %v147 = vpop.permute.xlu0 %146
    %v149 = vmul.f32 %v122, %v147
    %v151 = vrot.slane %v143, 7
    %152 = vrot.lane.b32.xlu0 %v151, 32
    %v153 = vpop.permute.xlu0 %152
    %vm155 = vcmask 1040384
    %v156 = vsel %vm155, %v149, %v153
    %158 = vrot.lane.b32.xlu0 %v156, 64
    %v159 = vpop.permute.xlu0 %158
    %vm161 = vcmask 254976
    %162 = vst.msk [vmem:[%s4] sm:$0x3] %vm161, %v159
    // Predicated region
    $region22: #{naive_lstm_forward.1} parent=1 // pred_check
      _
    $region23: #{naive_lstm_forward.1} parent=1 // pred_check_branch
      %164 = sbr.rel (0) target = $region25
    $region24: #{naive_lstm_forward.1} parent=1 // pred_region
      _
    $region25: #{naive_lstm_forward.1} parent=1 // pred_fallthru
      _
    // Predicated region
    $region26: #{naive_lstm_forward.1} parent=1 // pred_check
      _
    $region27: #{naive_lstm_forward.1} parent=1 // pred_check_branch
      %166 = sbr.rel (0) target = $region29
    $region28: #{naive_lstm_forward.1} parent=1 // pred_region
      _
    $region29: #{naive_lstm_forward.1} parent=1 // pred_fallthru
      _
    %167 = vsyncpa [#allocation3], 1

</llo_original>
